<compile_context>
chip_gen: v7x
topology: tpu7x:2x2x1
jax: 0.10.0
libtpu: 0.0.40
codegen_flags: <defaults>
</compile_context>

<pallas_src>
import functools

import jax
import jax.numpy as jnp
from jax import lax
from jax.experimental import pallas as pl
from jax.experimental.pallas import tpu as pltpu


def _round_up(v, m):
    return ((v + m - 1) // m) * m


def _coordconv_kernel(x_ref, w_ref, b_ref, o_ref, *, g, offsets):
    # x_ref: (g, C_pad, L_pad)  augmented images, flattened padded spatial on lanes
    # w_ref: (Cout, K_pad)      K_pad = KH*KW*C_pad, rows ordered (tap, channel)
    # b_ref: (Cout, 1)
    # o_ref: (g, Cout, L_pad)
    w = w_ref[...]                            # small; stays resident in vregs
    b = b_ref[...].astype(jnp.float32)
    for j in range(g):                        # static unroll over images in this block
        xj = x_ref[j]                         # (C_pad, L_pad)
        l_pad = xj.shape[1]
        # In-VMEM im2col: tap[:, q] = xj[:, q + off] for every valid output column q
        # (pltpu.roll follows jnp.roll semantics, so shift = L_pad - off; the
        #  wrapped-around tail only lands in columns the wrapper slices away).
        taps = [xj if off == 0 else pltpu.roll(xj, shift=l_pad - off, axis=1)
                for off in offsets]
        patches = jnp.concatenate(taps, axis=0)      # (K_pad, L_pad), 8-row aligned
        yj = jnp.dot(w, patches, preferred_element_type=jnp.float32)   # (Cout, L_pad)
        o_ref[j] = (yj + b).astype(o_ref.dtype)


def concat_coord_conv2d_forward(t, x, weight, bias=None, *, stride=1, padding=0,
                                dilation=1, groups=1, transpose=False,
                                max_images_per_step=16,
                                vmem_budget_bytes=12 * 1024 * 1024):
    """y = Conv2d(concat([x, t, hh, ww], ch), W, b).  NCHW in / NCHW out."""
    if transpose or groups != 1:
        # TODO(synk): ConvTranspose2d / groups>1 variants have no Pallas path here.
        raise NotImplementedError("only the default groups=1 forward conv is supported")

    B, Cin, H, W = x.shape
    Cout, C_aug, KH, KW = weight.shape
    assert C_aug == Cin + 3, "weight must have dim_in + 3 input channels"
    dt = x.dtype
    itemsize = jnp.dtype(dt).itemsize
    if bias is None:
        bias = jnp.zeros((Cout,), dt)

    # ---- ConcatCoordConv2d augmentation: [x, t, row-coord, col-coord] ------------
    hh = jnp.broadcast_to(jnp.arange(H, dtype=dt).reshape(1, 1, H, 1), (B, 1, H, W))
    ww = jnp.broadcast_to(jnp.arange(W, dtype=dt).reshape(1, 1, 1, W), (B, 1, H, W))
    tt = jnp.broadcast_to(jnp.asarray(t, dtype=dt).reshape(1, 1, 1, 1), (B, 1, H, W))
    x_aug = jnp.concatenate([x, tt, hh, ww], axis=1)              # (B, C_aug, H, W)

    # ---- layout prep (fuses into one XLA pass producing the kernel input) --------
    c_pad = _round_up(C_aug, 8)            # sublane-aligned tap slabs inside the kernel
    Hp, Wp = H + 2 * padding, W + 2 * padding
    L = Hp * Wp
    l_pad = _round_up(L, 128)              # pad flattened spatial only to 128 lanes
    x_aug = jnp.pad(x_aug, ((0, 0), (0, c_pad - C_aug),
                            (padding, padding), (padding, padding)))
    x_flat = x_aug.reshape(B, c_pad, L)
    x_flat = jnp.pad(x_flat, ((0, 0), (0, 0), (0, l_pad - L)))     # (B, C_pad, L_pad)

    # valid stride-1 output extent; stride>1 is handled by subsampling afterwards
    Hv = Hp - dilation * (KH - 1)
    Wv = Wp - dilation * (KW - 1)
    assert Hv >= 1 and Wv >= 1, "kernel does not fit inside the (padded) input"

    # flat lane offsets of the KH*KW taps (valid outputs never read past their image)
    offsets = tuple(kh * dilation * Wp + kw * dilation
                    for kh in range(KH) for kw in range(KW))
    k_pad = KH * KW * c_pad

    # weights -> (Cout, K_pad) with row order (tap, channel); bias -> (Cout, 1)
    w_mat = jnp.transpose(weight.astype(dt), (0, 2, 3, 1)).reshape(Cout, KH * KW, C_aug)
    w_mat = jnp.pad(w_mat, ((0, 0), (0, 0), (0, c_pad - C_aug))).reshape(Cout, k_pad)
    b_mat = bias.astype(dt).reshape(Cout, 1)

    # ---- images per grid step: biggest g fitting a conservative VMEM budget ------
    # (budget leaves ample headroom inside v7x's 32 MiB scoped / 64 MiB physical VMEM)
    def vmem_estimate(g_):
        blocks = 2 * g_ * c_pad * l_pad * itemsize     # double-buffered input block
        blocks += 2 * g_ * Cout * l_pad * itemsize     # double-buffered output block
        inner = (c_pad + 2 * k_pad) * l_pad * itemsize  # xj + taps + patches values
        inner += Cout * l_pad * 4                       # f32 matmul result
        return blocks + inner

    g = 1
    max_g = max(1, min(B, max_images_per_step))
    for cand in range(2, max_g + 1):
        if vmem_estimate(cand) <= vmem_budget_bytes:
            g = cand
    # TODO(synk): a single image whose vmem_estimate(1) exceeds the budget would need
    #             intra-image row-group tiling with halos; not implemented.

    n_steps = (B + g - 1) // g
    Bp = n_steps * g                         # at most g-1 zero images of batch padding
    if Bp > B:
        x_flat = jnp.pad(x_flat, ((0, Bp - B), (0, 0), (0, 0)))

    kernel = functools.partial(_coordconv_kernel, g=g, offsets=offsets)

    flops = 2 * Bp * Cout * k_pad * l_pad
    bytes_accessed = itemsize * (Bp * c_pad * l_pad + Cout * k_pad + Cout
                                 + Bp * Cout * l_pad)

    y_flat = pl.pallas_call(
        kernel,
        out_shape=jax.ShapeDtypeStruct((Bp, Cout, l_pad), dt),
        grid=(n_steps,),
        in_specs=[
            pl.BlockSpec((g, c_pad, l_pad), lambda i: (i, 0, 0)),   # images, streamed
            pl.BlockSpec((Cout, k_pad), lambda i: (0, 0)),          # weights, resident
            pl.BlockSpec((Cout, 1), lambda i: (0, 0)),              # bias, resident
        ],
        out_specs=pl.BlockSpec((g, Cout, l_pad), lambda i: (i, 0, 0)),
        compiler_params=pltpu.CompilerParams(
            dimension_semantics=("parallel",),
            vmem_limit_bytes=32 * 1024 * 1024),
        cost_estimate=pl.CostEstimate(flops=flops, transcendentals=0,
                                      bytes_accessed=bytes_accessed),
    )(x_flat, w_mat, b_mat)

    # (Bp, Cout, L_pad) -> (B, Cout, Hout, Wout): layout-preserving slices only.
    y = y_flat[:B, :, :L].reshape(B, Cout, Hp, Wp)
    return y[:, :, :Hv:stride, :Wv:stride]


if __name__ == "__main__":
    # Module config: ConcatCoordConv2d(dim_in=4, dim_out=8) with defaults
    # ksize=3, stride=1, padding=0  ->  Conv2d(7, 8, kernel_size=3, stride=1, padding=0).
    B, Cin, H, W = 2, 4, 16, 16
    Cout = 8
    ksize, stride, padding = 3, 1, 0
    C_aug = Cin + 3

    key = jax.random.PRNGKey(0)
    kx, kwt, kb = jax.random.split(key, 3)
    x = jax.random.normal(kx, (B, Cin, H, W), dtype=jnp.float32)
    fan_in = C_aug * ksize * ksize
    bound = 1.0 / (fan_in ** 0.5)
    weight = jax.random.uniform(kwt, (Cout, C_aug, ksize, ksize), jnp.float32,
                                minval=-bound, maxval=bound)
    bias = jax.random.uniform(kb, (Cout,), jnp.float32, minval=-bound, maxval=bound)
    t = jnp.float32(0.7)

    fwd = jax.jit(functools.partial(concat_coord_conv2d_forward,
                                    stride=stride, padding=padding))
    y = jax.block_until_ready(fwd(t, x, weight, bias))

    # Reference: same augmentation + XLA convolution (NCHW / OIHW).
    dt = x.dtype
    hh = jnp.broadcast_to(jnp.arange(H, dtype=dt).reshape(1, 1, H, 1), (B, 1, H, W))
    ww = jnp.broadcast_to(jnp.arange(W, dtype=dt).reshape(1, 1, 1, W), (B, 1, H, W))
    tt = jnp.broadcast_to(jnp.asarray(t, dt).reshape(1, 1, 1, 1), (B, 1, H, W))
    x_aug = jnp.concatenate([x, tt, hh, ww], axis=1)
    y_ref = lax.conv_general_dilated(
        x_aug, weight, window_strides=(stride, stride),
        padding=((padding, padding), (padding, padding)),
        dimension_numbers=("NCHW", "OIHW", "NCHW"),
        precision=lax.Precision.HIGHEST,
    ) + bias.reshape(1, Cout, 1, 1)

    Hout = (H + 2 * padding - (ksize - 1) - 1) // stride + 1
    Wout = (W + 2 * padding - (ksize - 1) - 1) // stride + 1
    assert y.shape == (B, Cout, Hout, Wout), y.shape
    assert jnp.allclose(y, y_ref, atol=1e-3, rtol=1e-3), \
        float(jnp.max(jnp.abs(y - y_ref)))
    print("KERNEL_OK")
</pallas_src>

<mosaic_0001>
module attributes {stable_mosaic.version = 11 : i64} {
  func.func @_coordconv_kernel(%arg0: i32, %arg1: memref<2x8x256xf32, #tpu.memory_space<vmem>>, %arg2: memref<8x72xf32, #tpu.memory_space<vmem>>, %arg3: memref<8x1xf32, #tpu.memory_space<vmem>>, %arg4: memref<2x8x256xf32, #tpu.memory_space<vmem>>) attributes {dimension_semantics = [#tpu.dimension_semantics<parallel>], iteration_bounds = array<i64: 1>, scalar_prefetch = 0 : i64, scratch_operands = 0 : i64, tpu.core_type = #tpu.core_type<tc>, window_params = [{transform_indices = @transform_0, window_bounds = array<i64: 2, 8, 256>}, {pipeline_mode = #tpu.pipeline_mode<synchronous>, transform_indices = @transform_1, window_bounds = array<i64: 8, 72>}, {pipeline_mode = #tpu.pipeline_mode<synchronous>, transform_indices = @transform_2, window_bounds = array<i64: 8, 1>}, {transform_indices = @transform_3, window_bounds = array<i64: 2, 8, 256>}]} {
    %c0 = arith.constant 0 : index
    %c0_0 = arith.constant 0 : index
    %0 = vector.load %arg2[%c0, %c0_0] : memref<8x72xf32, #tpu.memory_space<vmem>>, vector<8x72xf32>
    %c0_1 = arith.constant 0 : index
    %c0_2 = arith.constant 0 : index
    %1 = vector.load %arg3[%c0_1, %c0_2] : memref<8x1xf32, #tpu.memory_space<vmem>>, vector<8x1xf32>
    %c0_3 = arith.constant 0 : index
    %c0_4 = arith.constant 0 : index
    %c0_5 = arith.constant 0 : index
    %2 = vector.load %arg1[%c0_3, %c0_4, %c0_5] : memref<2x8x256xf32, #tpu.memory_space<vmem>>, vector<1x8x256xf32>
    %3 = vector.shape_cast %2 : vector<1x8x256xf32> to vector<8x256xf32>
    %c255_i32 = arith.constant 255 : i32
    %4 = tpu.dynamic_rotate %3 by %c255_i32 dim 1 : vector<8x256xf32>, i32 -> vector<8x256xf32>
    %c254_i32 = arith.constant 254 : i32
    %5 = tpu.dynamic_rotate %3 by %c254_i32 dim 1 : vector<8x256xf32>, i32 -> vector<8x256xf32>
    %c240_i32 = arith.constant 240 : i32
    %6 = tpu.dynamic_rotate %3 by %c240_i32 dim 1 : vector<8x256xf32>, i32 -> vector<8x256xf32>
    %c239_i32 = arith.constant 239 : i32
    %7 = tpu.dynamic_rotate %3 by %c239_i32 dim 1 : vector<8x256xf32>, i32 -> vector<8x256xf32>
    %c238_i32 = arith.constant 238 : i32
    %8 = tpu.dynamic_rotate %3 by %c238_i32 dim 1 : vector<8x256xf32>, i32 -> vector<8x256xf32>
    %c224_i32 = arith.constant 224 : i32
    %9 = tpu.dynamic_rotate %3 by %c224_i32 dim 1 : vector<8x256xf32>, i32 -> vector<8x256xf32>
    %c223_i32 = arith.constant 223 : i32
    %10 = tpu.dynamic_rotate %3 by %c223_i32 dim 1 : vector<8x256xf32>, i32 -> vector<8x256xf32>
    %c222_i32 = arith.constant 222 : i32
    %11 = tpu.dynamic_rotate %3 by %c222_i32 dim 1 : vector<8x256xf32>, i32 -> vector<8x256xf32>
    %12 = tpu.concatenate %3, %4, %5, %6, %7, %8, %9, %10, %11 in 0 : vector<8x256xf32>, vector<8x256xf32>, vector<8x256xf32>, vector<8x256xf32>, vector<8x256xf32>, vector<8x256xf32>, vector<8x256xf32>, vector<8x256xf32>, vector<8x256xf32> -> vector<72x256xf32>
    %cst = arith.constant dense<0.000000e+00> : vector<8x256xf32>
    %13 = tpu.matmul %0, %12, %cst {dimension_numbers = #tpu.dot_dimension_numbers<[1], [0], [0], [1], [0, 0, 1, 1], [], []>} : vector<8x72xf32>, vector<72x256xf32>, vector<8x256xf32> -> vector<8x256xf32>
    %14 = vector.broadcast %1 : vector<8x1xf32> to vector<8x256xf32>
    %15 = arith.addf %13, %14 : vector<8x256xf32>
    %c0_6 = arith.constant 0 : index
    %c0_7 = arith.constant 0 : index
    %c0_8 = arith.constant 0 : index
    %16 = vector.load %arg4[%c0_6, %c0_7, %c0_8] : memref<2x8x256xf32, #tpu.memory_space<vmem>>, vector<1x8x256xf32>
    %17 = vector.shape_cast %16 : vector<1x8x256xf32> to vector<8x256xf32>
    %18 = vector.shape_cast %15 : vector<8x256xf32> to vector<1x8x256xf32>
    tpu.vector_store %arg4[%c0_6, %c0_7, %c0_8], %18 {strides = array<i32>} : memref<2x8x256xf32, #tpu.memory_space<vmem>>, vector<1x8x256xf32>,
    %c1 = arith.constant 1 : index
    %c0_9 = arith.constant 0 : index
    %c0_10 = arith.constant 0 : index
    %19 = vector.load %arg1[%c1, %c0_9, %c0_10] : memref<2x8x256xf32, #tpu.memory_space<vmem>>, vector<1x8x256xf32>
    %20 = vector.shape_cast %19 : vector<1x8x256xf32> to vector<8x256xf32>
    %c255_i32_11 = arith.constant 255 : i32
    %21 = tpu.dynamic_rotate %20 by %c255_i32_11 dim 1 : vector<8x256xf32>, i32 -> vector<8x256xf32>
    %c254_i32_12 = arith.constant 254 : i32
    %22 = tpu.dynamic_rotate %20 by %c254_i32_12 dim 1 : vector<8x256xf32>, i32 -> vector<8x256xf32>
    %c240_i32_13 = arith.constant 240 : i32
    %23 = tpu.dynamic_rotate %20 by %c240_i32_13 dim 1 : vector<8x256xf32>, i32 -> vector<8x256xf32>
    %c239_i32_14 = arith.constant 239 : i32
    %24 = tpu.dynamic_rotate %20 by %c239_i32_14 dim 1 : vector<8x256xf32>, i32 -> vector<8x256xf32>
    %c238_i32_15 = arith.constant 238 : i32
    %25 = tpu.dynamic_rotate %20 by %c238_i32_15 dim 1 : vector<8x256xf32>, i32 -> vector<8x256xf32>
    %c224_i32_16 = arith.constant 224 : i32
    %26 = tpu.dynamic_rotate %20 by %c224_i32_16 dim 1 : vector<8x256xf32>, i32 -> vector<8x256xf32>
    %c223_i32_17 = arith.constant 223 : i32
    %27 = tpu.dynamic_rotate %20 by %c223_i32_17 dim 1 : vector<8x256xf32>, i32 -> vector<8x256xf32>
    %c222_i32_18 = arith.constant 222 : i32
    %28 = tpu.dynamic_rotate %20 by %c222_i32_18 dim 1 : vector<8x256xf32>, i32 -> vector<8x256xf32>
    %29 = tpu.concatenate %20, %21, %22, %23, %24, %25, %26, %27, %28 in 0 : vector<8x256xf32>, vector<8x256xf32>, vector<8x256xf32>, vector<8x256xf32>, vector<8x256xf32>, vector<8x256xf32>, vector<8x256xf32>, vector<8x256xf32>, vector<8x256xf32> -> vector<72x256xf32>
    %cst_19 = arith.constant dense<0.000000e+00> : vector<8x256xf32>
    %30 = tpu.matmul %0, %29, %cst_19 {dimension_numbers = #tpu.dot_dimension_numbers<[1], [0], [0], [1], [0, 0, 1, 1], [], []>} : vector<8x72xf32>, vector<72x256xf32>, vector<8x256xf32> -> vector<8x256xf32>
    %31 = vector.broadcast %1 : vector<8x1xf32> to vector<8x256xf32>
    %32 = arith.addf %30, %31 : vector<8x256xf32>
    %c1_20 = arith.constant 1 : index
    %c0_21 = arith.constant 0 : index
    %c0_22 = arith.constant 0 : index
    %33 = vector.load %arg4[%c1_20, %c0_21, %c0_22] : memref<2x8x256xf32, #tpu.memory_space<vmem>>, vector<1x8x256xf32>
    %34 = vector.shape_cast %33 : vector<1x8x256xf32> to vector<8x256xf32>
    %35 = vector.shape_cast %32 : vector<8x256xf32> to vector<1x8x256xf32>
    tpu.vector_store %arg4[%c1_20, %c0_21, %c0_22], %35 {strides = array<i32>} : memref<2x8x256xf32, #tpu.memory_space<vmem>>, vector<1x8x256xf32>,
    return
  }
  func.func @transform_0(%arg0: i32) -> (i32, i32, i32) {
    %c0_i32 = arith.constant 0 : i32
    %c0_i32_0 = arith.constant 0 : i32
    %c0_i32_1 = arith.constant 0 : i32
    return %arg0, %c0_i32, %c0_i32_0 : i32, i32, i32
  }
  func.func @transform_1(%arg0: i32) -> (i32, i32) {
    %c0_i32 = arith.constant 0 : i32
    %c0_i32_0 = arith.constant 0 : i32
    %c0_i32_1 = arith.constant 0 : i32
    return %c0_i32, %c0_i32_0 : i32, i32
  }
  func.func @transform_2(%arg0: i32) -> (i32, i32) {
    %c0_i32 = arith.constant 0 : i32
    %c0_i32_0 = arith.constant 0 : i32
    %c0_i32_1 = arith.constant 0 : i32
    return %c0_i32, %c0_i32_0 : i32, i32
  }
  func.func @transform_3(%arg0: i32) -> (i32, i32, i32) {
    %c0_i32 = arith.constant 0 : i32
    %c0_i32_0 = arith.constant 0 : i32
    %c0_i32_1 = arith.constant 0 : i32
    return %arg0, %c0_i32, %c0_i32_0 : i32, i32, i32
  }
}

</mosaic_0001>

<llo_original>
// kernel: concat_coord_conv2d_forward.1
$region0: #{concat_coord_conv2d_forward.1}
  #allocation0 [shape = 'u32[]', space=smem, size = 0x4, offset = 0x4, fixed_abs, tag = 'smem constant byte address 0x4 - core index']
  #allocation1 [shape = 'u32[144,128]{1,0:T(1,128)}', space=vmem, size = 0x12000, scoped, tag = 'internal scratch']
  %s0 = inlined_call_operand.vmem [shape: f32[2,8,256], index: 0, kind: input, shape index: {}]
  %s1 = inlined_call_operand.vmem [shape: f32[8,72], index: 1, kind: input, shape index: {}]
  %s2 = inlined_call_operand.vmem [shape: f32[8,1], index: 2, kind: input, shape index: {}]
  %s3 = inlined_call_operand.vmem [shape: f32[2,8,256], index: 3, kind: output, shape index: {}]
  %s4 = sld [smem:[#allocation0]]
  $region22: #{concat_coord_conv2d_forward.1} parent=0
    _
  %s6 = ssub.s32 1, %s4
  %s7 = scalar_select 0, %s6, %s4
  // Predicated region
  $region2: #{concat_coord_conv2d_forward.1} parent=0 // pred_check
    _
  $region3: #{concat_coord_conv2d_forward.1} parent=0 // pred_check_branch
    %9 = sbr.rel (0) target = $region5
  $region4: #{concat_coord_conv2d_forward.1} parent=0 // pred_region
    _
  $region5: #{concat_coord_conv2d_forward.1} parent=0 // pred_fallthru
    _
  // Predicated region
  $region6: #{concat_coord_conv2d_forward.1} parent=0 // pred_check
    _
  $region7: #{concat_coord_conv2d_forward.1} parent=0 // pred_check_branch
    %11 = sbr.rel (0) target = $region9
  $region8: #{concat_coord_conv2d_forward.1} parent=0 // pred_region
    _
  $region9: #{concat_coord_conv2d_forward.1} parent=0 // pred_fallthru
    _
  // Predicated region
  $region10: #{concat_coord_conv2d_forward.1} parent=0 // pred_check
    _
  $region11: #{concat_coord_conv2d_forward.1} parent=0 // pred_check_branch
    %13 = sbr.rel (0) target = $region13
  $region12: #{concat_coord_conv2d_forward.1} parent=0 // pred_region
    _
  $region13: #{concat_coord_conv2d_forward.1} parent=0 // pred_fallthru
    _
  %v14 = vld [vmem:[%s1] sm:$0xff]
  %v15 = vld [vmem:[%s2] sm:$0xff]
  %v16 = vld [vmem:[%s0] sm:$0xff]
  %v17 = vld [vmem:[%s0 + $0x8] sm:$0xff]
  %18 = vrot.lane.b32.xlu0 %v16, 127
  %v19 = vpop.permute.xlu0 %18
  %20 = vrot.lane.b32.xlu0 %v17, 127
  %v21 = vpop.permute.xlu0 %20
  %v22 = vlaneseq
  %v23 = vand.u32 %v22, 127
  %vm24 = vcmp.lt.s32.totalorder %v23, 127
  %v25 = vsel %vm24, %v19, %v21
  %v26 = vsel %vm24, %v21, %v19
  %27 = vrot.lane.b32.xlu0 %v16, 126
  %v28 = vpop.permute.xlu0 %27
  %29 = vrot.lane.b32.xlu0 %v17, 126
  %v30 = vpop.permute.xlu0 %29
  %vm31 = vcmp.lt.s32.totalorder %v23, 126
  %v32 = vsel %vm31, %v28, %v30
  %v33 = vsel %vm31, %v30, %v28
  %34 = vrot.lane.b32.xlu0 %v16, 112
  %v35 = vpop.permute.xlu0 %34
  %36 = vrot.lane.b32.xlu0 %v17, 112
  %v37 = vpop.permute.xlu0 %36
  %vm38 = vcmp.lt.s32.totalorder %v23, 112
  %v39 = vsel %vm38, %v35, %v37
  %v40 = vsel %vm38, %v37, %v35
  %41 = vrot.lane.b32.xlu0 %v16, 111
  %v42 = vpop.permute.xlu0 %41
  %43 = vrot.lane.b32.xlu0 %v17, 111
  %v44 = vpop.permute.xlu0 %43
  %vm45 = vcmp.lt.s32.totalorder %v23, 111
  %v46 = vsel %vm45, %v42, %v44
  %v47 = vsel %vm45, %v44, %v42
  %48 = vrot.lane.b32.xlu0 %v16, 110
  %v49 = vpop.permute.xlu0 %48
  %50 = vrot.lane.b32.xlu0 %v17, 110
  %v51 = vpop.permute.xlu0 %50
  %vm52 = vcmp.lt.s32.totalorder %v23, 110
  %v53 = vsel %vm52, %v49, %v51
  %v54 = vsel %vm52, %v51, %v49
  %55 = vrot.lane.b32.xlu0 %v16, 96
  %v56 = vpop.permute.xlu0 %55
  %57 = vrot.lane.b32.xlu0 %v17, 96
  %v58 = vpop.permute.xlu0 %57
  %vm59 = vcmp.lt.s32.totalorder %v23, 96
  %v60 = vsel %vm59, %v56, %v58
  %v61 = vsel %vm59, %v58, %v56
  %62 = vrot.lane.b32.xlu0 %v16, 95
  %v63 = vpop.permute.xlu0 %62
  %64 = vrot.lane.b32.xlu0 %v17, 95
  %v65 = vpop.permute.xlu0 %64
  %vm66 = vcmp.lt.s32.totalorder %v23, 95
  %v67 = vsel %vm66, %v63, %v65
  %v68 = vsel %vm66, %v65, %v63
  %69 = vrot.lane.b32.xlu0 %v16, 94
  %v70 = vpop.permute.xlu0 %69
  %71 = vrot.lane.b32.xlu0 %v17, 94
  %v72 = vpop.permute.xlu0 %71
  %vm73 = vcmp.lt.s32.totalorder %v23, 94
  %v74 = vsel %vm73, %v70, %v72
  %v75 = vsel %vm73, %v72, %v70
  %77 = vset.pattern.permute.xlu0 0
  %78 = vperm.xlu0 %77, %v15
  %v79 = vpop.permute.xlu0 %78
  %vm81 = vcmask 588800
  %v83 = vsel %vm81, %v14, 0
  %85 = vmatprep.subr.mxu0 %v17
  %86 = vmatpush1.msra.mxu0 %v16
  %87 = vmatprep.subr.mxu0 %v26
  %88 = vmatpush1.msra.mxu0 %v25
  %89 = vmatprep.subr.mxu0 %v33
  %90 = vmatpush1.msra.mxu0 %v32
  %91 = vmatprep.subr.mxu0 %v40
  %92 = vmatpush1.msra.mxu0 %v39
  %93 = vmatprep.subr.mxu0 %v47
  %94 = vmatpush1.msra.mxu0 %v46
  %95 = vmatprep.subr.mxu0 %v54
  %96 = vmatpush1.msra.mxu0 %v53
  %97 = vmatprep.subr.mxu0 %v61
  %98 = vmatpush1.msra.mxu0 %v60
  %99 = vmatprep.subr.mxu0 %v68
  %100 = vmatpush1.msra.mxu0 %v67
  %101 = vmatprep.subr.mxu0 %v75
  %102 = vmatpush1.msra.mxu0 %v74
  %103 = vmatprep.subr.mxu0 0.0
  %104 = vmatpush1.msra.mxu0 0.0
  %105 = vmatprep.subr.mxu0 0.0
  %106 = vmatpush1.msra.mxu0 0.0
  %107 = vmatprep.subr.mxu0 0.0
  %108 = vmatpush1.msra.mxu0 0.0
  %109 = vmatprep.subr.mxu0 0.0
  %110 = vmatpush1.msra.mxu0 0.0
  %111 = vmatprep.subr.mxu0 0.0
  %112 = vmatpush1.msra.mxu0 0.0
  %113 = vmatprep.subr.mxu0 0.0
  %114 = vmatpush1.msra.mxu0 0.0
  %115 = vmatprep.subr.mxu0 0.0
  %116 = vmatpush1.msra.mxu0 0.0
  %117 = vmatprep.subr.mxu0 0.0
  %118 = vmatpush1.msra.mxu0 0.0
  %119 = vmatprep.subr.mxu0 0.0
  %120 = vmatpush1.msra.mxu0 0.0
  %121 = vmatprep.subr.mxu0 0.0
  %122 = vmatpush1.msra.mxu0 0.0
  %123 = vmatprep.subr.mxu0 0.0
  %124 = vmatpush1.msra.mxu0 0.0
  %125 = vmatprep.subr.mxu0 0.0
  %126 = vmatpush1.msra.mxu0 0.0
  %127 = vmatprep.subr.mxu0 0.0
  %128 = vmatpush1.msra.mxu0 0.0
  %129 = vmatprep.subr.mxu0 0.0
  %130 = vmatpush1.msra.mxu0 0.0
  %131 = vmatprep.subr.mxu0 0.0
  %132 = vmatpush1.msra.mxu0 0.0
  %133 = vmatprep.subr.mxu0 0.0
  %134 = vmatpush1.msra.mxu0 0.0
  %135 = vmatprep.subr.mxu0 0.0
  %136 = vmatpush1.msra.mxu0 0.0
  %137 = vmatprep.subr.mxu0 0.0
  %138 = vmatpush1.msra.mxu0 0.0
  %139 = vmatprep.subr.mxu0 0.0
  %140 = vmatpush1.msra.mxu0 0.0
  %141 = vmatprep.subr.mxu0 0.0
  %142 = vmatpush1.msra.mxu0 0.0
  %143 = vmatprep.subr.mxu0 0.0
  %144 = vmatpush1.msra.mxu0 0.0
  %145 = vmatprep.subr.mxu0 0.0
  %146 = vmatpush1.msra.mxu0 0.0
  %147 = vmatprep.subr.mxu0 0.0
  %148 = vmatpush1.msra.mxu0 0.0
  %149 = vmatprep.mubr.f32.mxu0 0.0
  %150 = vmatmul.mubr.f32.gmra.mrb[0].mxu0 %v83
  %v151 = vpop.f32.mrb[0].mxu0
  %v152 = vadd.f32 %v79, %v151
  %v153 = vpop.f32.mrb[0].mxu0
  %v154 = vadd.f32 %v79, %v153
  %155 = vdwg.mxu0
  %156 = vst [vmem:[%s3] sm:$0xff] %v152
  %157 = vst [vmem:[%s3 + $0x8] sm:$0xff] %v154
  %s158 = scalar_lea.vmem %s0, 16
  %v159 = vld [vmem:[%s158] sm:$0xff]
  %v160 = vld [vmem:[%s158 + $0x8] sm:$0xff]
  %161 = vrot.lane.b32.xlu0 %v159, 127
  %v162 = vpop.permute.xlu0 %161
  %163 = vrot.lane.b32.xlu0 %v160, 127
  %v164 = vpop.permute.xlu0 %163
  %v165 = vsel %vm24, %v162, %v164
  %v166 = vsel %vm24, %v164, %v162
  %167 = vrot.lane.b32.xlu0 %v159, 126
  %v168 = vpop.permute.xlu0 %167
  %169 = vrot.lane.b32.xlu0 %v160, 126
  %v170 = vpop.permute.xlu0 %169
  %v171 = vsel %vm31, %v168, %v170
  %v172 = vsel %vm31, %v170, %v168
  %173 = vrot.lane.b32.xlu0 %v159, 112
  %v174 = vpop.permute.xlu0 %173
  %175 = vrot.lane.b32.xlu0 %v160, 112
  %v176 = vpop.permute.xlu0 %175
  %v177 = vsel %vm38, %v174, %v176
  %v178 = vsel %vm38, %v176, %v174
  %179 = vrot.lane.b32.xlu0 %v159, 111
  %v180 = vpop.permute.xlu0 %179
  %181 = vrot.lane.b32.xlu0 %v160, 111
  %v182 = vpop.permute.xlu0 %181
  %v183 = vsel %vm45, %v180, %v182
  %v184 = vsel %vm45, %v182, %v180
  %185 = vrot.lane.b32.xlu0 %v159, 110
  %v186 = vpop.permute.xlu0 %185
  %187 = vrot.lane.b32.xlu0 %v160, 110
  %v188 = vpop.permute.xlu0 %187
  %v189 = vsel %vm52, %v186, %v188
  %v190 = vsel %vm52, %v188, %v186
  %191 = vrot.lane.b32.xlu0 %v159, 96
  %v192 = vpop.permute.xlu0 %191
  %193 = vrot.lane.b32.xlu0 %v160, 96
  %v194 = vpop.permute.xlu0 %193
  %v195 = vsel %vm59, %v192, %v194
  %v196 = vsel %vm59, %v194, %v192
  %197 = vrot.lane.b32.xlu0 %v159, 95
  %v198 = vpop.permute.xlu0 %197
  %199 = vrot.lane.b32.xlu0 %v160, 95
  %v200 = vpop.permute.xlu0 %199
  %v201 = vsel %vm66, %v198, %v200
  %v202 = vsel %vm66, %v200, %v198
  %203 = vrot.lane.b32.xlu0 %v159, 94
  %v204 = vpop.permute.xlu0 %203
  %205 = vrot.lane.b32.xlu0 %v160, 94
  %v206 = vpop.permute.xlu0 %205
  %v207 = vsel %vm73, %v204, %v206
  %v208 = vsel %vm73, %v206, %v204
  %209 = vmatprep.subr.mxu0 %v160
  %210 = vmatpush1.msra.mxu0 %v159
  %211 = vmatprep.subr.mxu0 %v166
  %212 = vmatpush1.msra.mxu0 %v165
  %213 = vmatprep.subr.mxu0 %v172
  %214 = vmatpush1.msra.mxu0 %v171
  %215 = vmatprep.subr.mxu0 %v178
  %216 = vmatpush1.msra.mxu0 %v177
  %217 = vmatprep.subr.mxu0 %v184
  %218 = vmatpush1.msra.mxu0 %v183
  %219 = vmatprep.subr.mxu0 %v190
  %220 = vmatpush1.msra.mxu0 %v189
  %221 = vmatprep.subr.mxu0 %v196
  %222 = vmatpush1.msra.mxu0 %v195
  %223 = vmatprep.subr.mxu0 %v202
  %224 = vmatpush1.msra.mxu0 %v201
  %225 = vmatprep.subr.mxu0 %v208
  %226 = vmatpush1.msra.mxu0 %v207
  %227 = vmatprep.subr.mxu0 0.0
  %228 = vmatpush1.msra.mxu0 0.0
  %229 = vmatprep.subr.mxu0 0.0
  %230 = vmatpush1.msra.mxu0 0.0
  %231 = vmatprep.subr.mxu0 0.0
  %232 = vmatpush1.msra.mxu0 0.0
  %233 = vmatprep.subr.mxu0 0.0
  %234 = vmatpush1.msra.mxu0 0.0
  %235 = vmatprep.subr.mxu0 0.0
  %236 = vmatpush1.msra.mxu0 0.0
  %237 = vmatprep.subr.mxu0 0.0
  %238 = vmatpush1.msra.mxu0 0.0
  %239 = vmatprep.subr.mxu0 0.0
  %240 = vmatpush1.msra.mxu0 0.0
  %241 = vmatprep.subr.mxu0 0.0
  %242 = vmatpush1.msra.mxu0 0.0
  %243 = vmatprep.subr.mxu0 0.0
  %244 = vmatpush1.msra.mxu0 0.0
  %245 = vmatprep.subr.mxu0 0.0
  %246 = vmatpush1.msra.mxu0 0.0
  %247 = vmatprep.subr.mxu0 0.0
  %248 = vmatpush1.msra.mxu0 0.0
  %249 = vmatprep.subr.mxu0 0.0
  %250 = vmatpush1.msra.mxu0 0.0
  %251 = vmatprep.subr.mxu0 0.0
  %252 = vmatpush1.msra.mxu0 0.0
  %253 = vmatprep.subr.mxu0 0.0
  %254 = vmatpush1.msra.mxu0 0.0
  %255 = vmatprep.subr.mxu0 0.0
  %256 = vmatpush1.msra.mxu0 0.0
  %257 = vmatprep.subr.mxu0 0.0
  %258 = vmatpush1.msra.mxu0 0.0
  %259 = vmatprep.subr.mxu0 0.0
  %260 = vmatpush1.msra.mxu0 0.0
  %261 = vmatprep.subr.mxu0 0.0
  %262 = vmatpush1.msra.mxu0 0.0
  %263 = vmatprep.subr.mxu0 0.0
  %264 = vmatpush1.msra.mxu0 0.0
  %265 = vmatprep.subr.mxu0 0.0
  %266 = vmatpush1.msra.mxu0 0.0
  %267 = vmatprep.subr.mxu0 0.0
  %268 = vmatpush1.msra.mxu0 0.0
  %269 = vmatprep.subr.mxu0 0.0
  %270 = vmatpush1.msra.mxu0 0.0
  %271 = vmatprep.subr.mxu0 0.0
  %272 = vmatpush1.msra.mxu0 0.0
  %273 = vmatprep.mubr.f32.mxu0 0.0
  %274 = vmatmul.mubr.f32.gmra.mrb[0].mxu0 %v83
  %v275 = vpop.f32.mrb[0].mxu0
  %v276 = vadd.f32 %v79, %v275
  %v277 = vpop.f32.mrb[0].mxu0
  %v278 = vadd.f32 %v79, %v277
  %279 = vdwg.mxu0
  %s280 = scalar_lea.vmem %s3, 16
  %281 = vst [vmem:[%s280] sm:$0xff] %v276
  %282 = vst [vmem:[%s280 + $0x8] sm:$0xff] %v278
  // Predicated region
  $region14: #{concat_coord_conv2d_forward.1} parent=0 // pred_check
    _
  $region15: #{concat_coord_conv2d_forward.1} parent=0 // pred_check_branch
    %284 = sbr.rel (0) target = $region17
  $region16: #{concat_coord_conv2d_forward.1} parent=0 // pred_region
    _
  $region17: #{concat_coord_conv2d_forward.1} parent=0 // pred_fallthru
    _
  // Predicated region
  $region18: #{concat_coord_conv2d_forward.1} parent=0 // pred_check
    _
  $region19: #{concat_coord_conv2d_forward.1} parent=0 // pred_check_branch
    %286 = sbr.rel (0) target = $region21
  $region20: #{concat_coord_conv2d_forward.1} parent=0 // pred_region
    _
  $region21: #{concat_coord_conv2d_forward.1} parent=0 // pred_fallthru
    _

</llo_original>
